<compile_context>
chip_gen: v5e
topology: v5e:2x2
jax: 0.10.0
libtpu: 0.0.40
codegen_flags: <defaults>
</compile_context>

<pallas_src>
import functools

import jax
import jax.numpy as jnp
from jax.experimental import pallas as pl
from jax.experimental.pallas import tpu as pltpu


def _round_up(x, m):
    return ((x + m - 1) // m) * m


def _attention_kernel(use_softmax, q_ref, r_ref, wq_ref, bq_ref, wk_ref,
                      vb_ref, out_ref):
    """One grid step == TB batch rows, all compute lane-dense over S*H.

    q_ref  : (TB, Q)      query rows for this batch block
    r_ref  : (TB, S*H)    ref rows, S folded into the lane dimension
    wq_ref : (Q, S*H)     W_query (transposed) tiled S times along lanes
    bq_ref : (1, S*H)     W_query bias tiled S times along lanes
    wk_ref : (S*H, S*H)   kron(I_S, W_ref^T)   (block-diagonal projection)
    vb_ref : (S*H, S)     kron(I_S, V[:,None]) (block-diagonal reduction)
    out_ref: (TB, S)      logits for this batch block
    """
    # q_tiled = query @ Wq_tiled + bq_tiled  -> (TB, S*H)
    # (one MXU matmul that directly produces the S-tiled projection; no
    #  in-kernel repeat/broadcast needed)
    q = jnp.dot(q_ref[...], wq_ref[...],
                preferred_element_type=jnp.float32) + bq_ref[...]

    # rp = ref @ kron(I_S, Wr)  -> (TB, S*H), one 256-wide MXU matmul.
    rp = jnp.dot(r_ref[...], wk_ref[...],
                 preferred_element_type=jnp.float32)

    # m = tanh(q + rp): fully lane-dense elementwise/EUP stage.
    m = jnp.tanh(q + rp)

    # logits[b, s] = sum_h m[b, s*H+h] * V[h]  via block-diagonal matmul.
    logits = jnp.dot(m, vb_ref[...].astype(jnp.float32),
                     preferred_element_type=jnp.float32)   # (TB, S)

    if use_softmax:
        mx = jnp.max(logits, axis=-1, keepdims=True)
        e = jnp.exp(logits - mx)
        logits = e / jnp.sum(e, axis=-1, keepdims=True)     # exact divide

    out_ref[...] = logits.astype(out_ref.dtype)


def attention_batch(query, ref, wq, bq, wr, v, *, use_softmax=False,
                    block_b=None, stream_dtype=None):
    """query: [B, Q], ref: [B, S, H], wq: [Q, H], bq: [H], wr: [H, H], v: [H].

    stream_dtype: optional dtype (e.g. jnp.bfloat16) for the dominant
    ref / W_kron HBM stream.  Default None keeps everything f32.
    """
    B, Q = query.shape
    _, S, H = ref.shape
    SH = S * H

    # ---- lane-dense weight prep (tiny, done once in the wrapper) ---------
    wq_t = jnp.tile(wq, (1, S))                                  # (Q, S*H)
    bq_t = jnp.tile(bq.reshape(1, H), (1, S))                    # (1, S*H)
    w_kron = jnp.kron(jnp.eye(S, dtype=wr.dtype), wr)            # (S*H, S*H)
    v_blk = jnp.kron(jnp.eye(S, dtype=v.dtype), v.reshape(H, 1))  # (S*H, S)

    # Flatten ref in the wrapper (contiguous -> free reshape in HBM).
    ref2 = ref.reshape(B, SH)
    if stream_dtype is not None:
        ref2 = ref2.astype(stream_dtype)
        w_kron = w_kron.astype(stream_dtype)

    elt = jnp.dtype(ref2.dtype).itemsize
    bytes_per_row = SH * elt

    # ---- choose batch tile TB with an explicit VMEM budget ----------------
    if block_b is not None:
        tb = block_b
    else:
        # Per batch row of tile: 2x streamed ref (double buffer) + ~4 ref-sized
        # f32 intermediates (q, rp, m, slack) + 2x query + 2x lane-padded out.
        per_row_budget = (2 * bytes_per_row + 4 * SH * 4 + 2 * Q * 4
                          + 2 * max(S, 128) * 4)
        tb_cap = min((4 << 20) // max(bytes_per_row, 1),   # ~4 MiB ref tile
                     (28 << 20) // max(per_row_budget, 1))  # ~28 MiB total
        tb_cap = max(16, (tb_cap // 16) * 16)
        if tb_cap >= B:
            tb = B                                   # single block
        else:
            # Keep >= 4 grid steps (v7x 2-TC sharding + pipelining), but do
            # not shrink the ref tile below ~1 MiB.
            tb_blocks = _round_up(-(-B // 4), 16)
            tb_floor = max(16, (((1 << 20) // max(bytes_per_row, 1)) // 16) * 16)
            tb = min(tb_cap, max(tb_floor, tb_blocks))

    n_blocks = pl.cdiv(B, tb)   # partial last block handled by Pallas, no pad

    # ---- VMEM limit: budgeted, safe on every generation (<= 48 MiB) -------
    ref_tile = tb * bytes_per_row
    weight_bytes = (wq_t.size * 4 + bq_t.size * 4 + v_blk.size * 4
                    + w_kron.size * elt)
    vmem_est = (2 * ref_tile                      # double-buffered ref stream
                + 4 * tb * SH * 4                 # f32 intermediates
                + 2 * tb * Q * 4                  # double-buffered query
                + 2 * tb * max(S, 128) * 4        # lane-padded out buffers
                + 2 * weight_bytes)               # resident weights
    vmem_limit = int(min(max(vmem_est + (4 << 20), 32 << 20), 48 << 20))

    kernel = functools.partial(_attention_kernel, use_softmax)

    out = pl.pallas_call(
        kernel,
        out_shape=jax.ShapeDtypeStruct((B, S), jnp.float32),
        grid_spec=pltpu.PrefetchScalarGridSpec(
            num_scalar_prefetch=0,
            grid=(n_blocks,),
            in_specs=[
                pl.BlockSpec((tb, Q), lambda b: (b, 0)),
                pl.BlockSpec((tb, SH), lambda b: (b, 0)),
                # Weights: constant block index -> fetched once, stay resident.
                pl.BlockSpec((Q, SH), lambda b: (0, 0)),
                pl.BlockSpec((1, SH), lambda b: (0, 0)),
                pl.BlockSpec((SH, SH), lambda b: (0, 0)),
                pl.BlockSpec((SH, S), lambda b: (0, 0)),
            ],
            out_specs=pl.BlockSpec((tb, S), lambda b: (b, 0)),
        ),
        compiler_params=pltpu.CompilerParams(
            dimension_semantics=("parallel",),
            vmem_limit_bytes=vmem_limit),
    )(query, ref2, wq_t, bq_t, w_kron, v_blk)

    return out


def attention_batch_ref(query, ref, wq, bq, wr, v, *, use_softmax=False):
    """Pure-JAX reference for correctness checking."""
    q = query @ wq + bq                      # [B, H]
    rp = jnp.einsum("bsh,hk->bsk", ref, wr)  # [B, S, H]
    m = jnp.tanh(q[:, None, :] + rp)
    logits = jnp.einsum("bsh,h->bs", m, v)
    if use_softmax:
        logits = jax.nn.softmax(logits, axis=-1)
    return logits


if __name__ == "__main__":
    hidden_size = 32
    query_size = 32

    key = jax.random.PRNGKey(0)
    k_q, k_r, k_wq, k_bq, k_wr, k_v, k_q2, k_r2 = jax.random.split(key, 8)

    # Deterministic parameter init mirroring the PyTorch module:
    #   W_query.weight ~ N(0, 0.001), W_query.bias ~ N(0, 0.0001)
    #   W_ref.weight   ~ N(0, 0.001) (no bias)
    #   V              ~ N(0, 0.0001)
    wq = jax.random.normal(k_wq, (query_size, hidden_size), jnp.float32) * 0.001
    bq = jax.random.normal(k_bq, (hidden_size,), jnp.float32) * 0.0001
    wr = jax.random.normal(k_wr, (hidden_size, hidden_size), jnp.float32) * 0.001
    v = jax.random.normal(k_v, (hidden_size,), jnp.float32) * 0.0001

    # --- small case (single batch block, use_softmax=False) ---------------
    B, S = 2, 8
    query = jax.random.normal(k_q, (B, query_size), jnp.float32)
    ref = jax.random.normal(k_r, (B, S, hidden_size), jnp.float32)

    out = attention_batch(query, ref, wq, bq, wr, v, use_softmax=False)
    out = jax.block_until_ready(out)
    expected = attention_batch_ref(query, ref, wq, bq, wr, v, use_softmax=False)
    assert out.shape == (B, S)
    assert jnp.allclose(out, expected, atol=1e-5, rtol=1e-5)

    # --- multi-block case with an uneven (unpadded) last block, softmax ----
    B2, S2 = 20, 8
    query2 = jax.random.normal(k_q2, (B2, query_size), jnp.float32)
    ref2 = jax.random.normal(k_r2, (B2, S2, hidden_size), jnp.float32)

    out2 = attention_batch(query2, ref2, wq, bq, wr, v,
                           use_softmax=True, block_b=8)
    out2 = jax.block_until_ready(out2)
    expected2 = attention_batch_ref(query2, ref2, wq, bq, wr, v,
                                    use_softmax=True)
    assert out2.shape == (B2, S2)
    assert jnp.allclose(out2, expected2, atol=1e-5, rtol=1e-5)

    print("KERNEL_OK")
</pallas_src>

<mosaic_0001>
module attributes {stable_mosaic.version = 11 : i64} {
  func.func @_attention_kernel(%arg0: i32, %arg1: memref<2x32xf32, #tpu.memory_space<vmem>>, %arg2: memref<2x256xf32, #tpu.memory_space<vmem>>, %arg3: memref<32x256xf32, #tpu.memory_space<vmem>>, %arg4: memref<1x256xf32, #tpu.memory_space<vmem>>, %arg5: memref<256x256xf32, #tpu.memory_space<vmem>>, %arg6: memref<256x8xf32, #tpu.memory_space<vmem>>, %arg7: memref<2x8xf32, #tpu.memory_space<vmem>>) attributes {dimension_semantics = [#tpu.dimension_semantics<parallel>], iteration_bounds = array<i64: 1>, scalar_prefetch = 0 : i64, scratch_operands = 0 : i64, tpu.core_type = #tpu.core_type<tc>, window_params = [{transform_indices = @transform_0, window_bounds = array<i64: 2, 32>}, {transform_indices = @transform_1, window_bounds = array<i64: 2, 256>}, {pipeline_mode = #tpu.pipeline_mode<synchronous>, transform_indices = @transform_2, window_bounds = array<i64: 32, 256>}, {pipeline_mode = #tpu.pipeline_mode<synchronous>, transform_indices = @transform_3, window_bounds = array<i64: 1, 256>}, {pipeline_mode = #tpu.pipeline_mode<synchronous>, transform_indices = @transform_4, window_bounds = array<i64: 256, 256>}, {pipeline_mode = #tpu.pipeline_mode<synchronous>, transform_indices = @transform_5, window_bounds = array<i64: 256, 8>}, {transform_indices = @transform_6, window_bounds = array<i64: 2, 8>}]} {
    %c0 = arith.constant 0 : index
    %c0_0 = arith.constant 0 : index
    %0 = vector.load %arg1[%c0, %c0_0] : memref<2x32xf32, #tpu.memory_space<vmem>>, vector<2x32xf32>
    %c0_1 = arith.constant 0 : index
    %c0_2 = arith.constant 0 : index
    %1 = vector.load %arg3[%c0_1, %c0_2] : memref<32x256xf32, #tpu.memory_space<vmem>>, vector<32x256xf32>
    %cst = arith.constant dense<0.000000e+00> : vector<2x256xf32>
    %2 = tpu.matmul %0, %1, %cst {dimension_numbers = #tpu.dot_dimension_numbers<[1], [0], [0], [1], [0, 0, 1, 1], [], []>} : vector<2x32xf32>, vector<32x256xf32>, vector<2x256xf32> -> vector<2x256xf32>
    %c0_3 = arith.constant 0 : index
    %c0_4 = arith.constant 0 : index
    %3 = vector.load %arg4[%c0_3, %c0_4] : memref<1x256xf32, #tpu.memory_space<vmem>>, vector<1x256xf32>
    %4 = vector.broadcast %3 : vector<1x256xf32> to vector<2x256xf32>
    %5 = arith.addf %2, %4 : vector<2x256xf32>
    %c0_5 = arith.constant 0 : index
    %c0_6 = arith.constant 0 : index
    %6 = vector.load %arg2[%c0_5, %c0_6] : memref<2x256xf32, #tpu.memory_space<vmem>>, vector<2x256xf32>
    %c0_7 = arith.constant 0 : index
    %c0_8 = arith.constant 0 : index
    %7 = vector.load %arg5[%c0_7, %c0_8] : memref<256x256xf32, #tpu.memory_space<vmem>>, vector<256x256xf32>
    %cst_9 = arith.constant dense<0.000000e+00> : vector<2x256xf32>
    %8 = tpu.matmul %6, %7, %cst_9 {dimension_numbers = #tpu.dot_dimension_numbers<[1], [0], [0], [1], [0, 0, 1, 1], [], []>} : vector<2x256xf32>, vector<256x256xf32>, vector<2x256xf32> -> vector<2x256xf32>
    %9 = arith.addf %5, %8 : vector<2x256xf32>
    %10 = math.tanh %9 : vector<2x256xf32>
    %c0_10 = arith.constant 0 : index
    %c0_11 = arith.constant 0 : index
    %11 = vector.load %arg6[%c0_10, %c0_11] : memref<256x8xf32, #tpu.memory_space<vmem>>, vector<256x8xf32>
    %cst_12 = arith.constant dense<0.000000e+00> : vector<2x8xf32>
    %12 = tpu.matmul %10, %11, %cst_12 {dimension_numbers = #tpu.dot_dimension_numbers<[1], [0], [0], [1], [0, 0, 1, 1], [], []>} : vector<2x256xf32>, vector<256x8xf32>, vector<2x8xf32> -> vector<2x8xf32>
    %c0_13 = arith.constant 0 : index
    %c0_14 = arith.constant 0 : index
    %13 = vector.load %arg7[%c0_13, %c0_14] : memref<2x8xf32, #tpu.memory_space<vmem>>, vector<2x8xf32>
    tpu.vector_store %arg7[%c0_13, %c0_14], %12 {strides = array<i32>} : memref<2x8xf32, #tpu.memory_space<vmem>>, vector<2x8xf32>,
    return
  }
  func.func @transform_0(%arg0: i32) -> (i32, i32) {
    %c0_i32 = arith.constant 0 : i32
    %c0_i32_0 = arith.constant 0 : i32
    return %arg0, %c0_i32 : i32, i32
  }
  func.func @transform_1(%arg0: i32) -> (i32, i32) {
    %c0_i32 = arith.constant 0 : i32
    %c0_i32_0 = arith.constant 0 : i32
    return %arg0, %c0_i32 : i32, i32
  }
  func.func @transform_2(%arg0: i32) -> (i32, i32) {
    %c0_i32 = arith.constant 0 : i32
    %c0_i32_0 = arith.constant 0 : i32
    %c0_i32_1 = arith.constant 0 : i32
    return %c0_i32, %c0_i32_0 : i32, i32
  }
  func.func @transform_3(%arg0: i32) -> (i32, i32) {
    %c0_i32 = arith.constant 0 : i32
    %c0_i32_0 = arith.constant 0 : i32
    %c0_i32_1 = arith.constant 0 : i32
    return %c0_i32, %c0_i32_0 : i32, i32
  }
  func.func @transform_4(%arg0: i32) -> (i32, i32) {
    %c0_i32 = arith.constant 0 : i32
    %c0_i32_0 = arith.constant 0 : i32
    %c0_i32_1 = arith.constant 0 : i32
    return %c0_i32, %c0_i32_0 : i32, i32
  }
  func.func @transform_5(%arg0: i32) -> (i32, i32) {
    %c0_i32 = arith.constant 0 : i32
    %c0_i32_0 = arith.constant 0 : i32
    %c0_i32_1 = arith.constant 0 : i32
    return %c0_i32, %c0_i32_0 : i32, i32
  }
  func.func @transform_6(%arg0: i32) -> (i32, i32) {
    %c0_i32 = arith.constant 0 : i32
    %c0_i32_0 = arith.constant 0 : i32
    return %arg0, %c0_i32 : i32, i32
  }
}

</mosaic_0001>

<llo_original>
// kernel: tpu_custom_call.1
$region0: #{tpu_custom_call.1}
  #allocation0 [shape = 'u32[]', space=smem, size = 0x4, offset = 0x4, fixed_abs, tag = 'smem constant byte address 0x4 - core index']
  #allocation1 [shape = 'u32[72,128]{1,0:T(1,128)}', space=vmem, size = 0x9000, scoped, tag = 'internal scratch']
  %s0 = inlined_call_operand.vmem [shape: f32[2,32], index: 0, kind: input, shape index: {}]
  %s1 = inlined_call_operand.vmem [shape: f32[2,256], index: 1, kind: input, shape index: {}]
  %s2 = inlined_call_operand.vmem [shape: f32[32,256], index: 2, kind: input, shape index: {}]
  %s3 = inlined_call_operand.vmem [shape: f32[1,256], index: 3, kind: input, shape index: {}]
  %s4 = inlined_call_operand.hbm [shape: f32[256,256], index: 4, kind: input, shape index: {}]
  %s5 = inlined_call_operand.vmem [shape: f32[256,8], index: 5, kind: input, shape index: {}]
  %s6 = inlined_call_operand.hbm [shape: f32[2,8], index: 6, kind: output, shape index: {}]
  %s7 = sld [smem:[#allocation0]]
  $region38: #{tpu_custom_call.1} parent=0
    _
  %s9 = ssub.s32 1, %s7
  %s10 = scalar_select 0, %s9, %s7
  $region1: #{tpu_custom_call.1} parent=0
    #allocation2 [shape = 'u8[262144]{0}', space=vmem, size = 0x40000, scoped, tag = 'input window, operand 4, single buffered']
    #allocation3 [shape = 's32[1]{0}', space=sflag, size = 0x4, scoped, tag = 'scoped memory for tpu_custom_call.1']
    #allocation4 [shape = 's32[1]{0}', space=sflag, size = 0x4, scoped, tag = 'scoped memory for tpu_custom_call.1']
    #allocation5 [shape = 'u8[1024]{0}', space=vmem, size = 0x400, scoped, tag = 'output window, operand 0, single buffered']
    %11 = vsyncpa [#allocation3], 0
    %12 = vsyncpa [#allocation4], 0
    // Predicated region
    $region2: #{tpu_custom_call.1} parent=1 // pred_check
      _
    $region3: #{tpu_custom_call.1} parent=1 // pred_check_branch
      %14 = sbr.rel (0) target = $region5
    $region4: #{tpu_custom_call.1} parent=1 // pred_region
      _
    $region5: #{tpu_custom_call.1} parent=1 // pred_fallthru
      _
    // Predicated region
    $region6: #{tpu_custom_call.1} parent=1 // pred_check
      _
    $region7: #{tpu_custom_call.1} parent=1 // pred_check_branch
      %16 = sbr.rel (0) target = $region9
    $region8: #{tpu_custom_call.1} parent=1 // pred_region
      _
    $region9: #{tpu_custom_call.1} parent=1 // pred_fallthru
      _
    // Predicated region
    $region10: #{tpu_custom_call.1} parent=1 // pred_check
      _
    $region11: #{tpu_custom_call.1} parent=1 // pred_check_branch
      %18 = sbr.rel (0) target = $region13
    $region12: #{tpu_custom_call.1} parent=1 // pred_region
      _
    $region13: #{tpu_custom_call.1} parent=1 // pred_fallthru
      _
    // Predicated region
    $region14: #{tpu_custom_call.1} parent=1 // pred_check
      _
    $region15: #{tpu_custom_call.1} parent=1 // pred_check_branch
      %20 = sbr.rel (0) target = $region17
    $region16: #{tpu_custom_call.1} parent=1 // pred_region
      _
    $region17: #{tpu_custom_call.1} parent=1 // pred_fallthru
      _
    // Predicated region
    $region18: #{tpu_custom_call.1} parent=1 // pred_check
      _
    $region19: #{tpu_custom_call.1} parent=1 // pred_check_branch
      %22 = sbr.rel (0) target = $region21
    $region20: #{tpu_custom_call.1} parent=1 // pred_region
      %24 = vsyncadd [#allocation3], 0
      %s25 = sshll.u32 %s4, 4
      %s26 = int_to_ptr.hbm [resolvable:$true] %s25
      %s27 = sshll.u32 [#allocation2], 4
      %s28 = int_to_ptr.vmem [resolvable:$true] %s27
      %33 = dma.hbm_to_vmem [thread:$0]  %s26, 8192, %s28, [#allocation3], 256, 256, 16
    $region21: #{tpu_custom_call.1} parent=1 // pred_fallthru
      _
    // Predicated region
    $region22: #{tpu_custom_call.1} parent=1 // pred_check
      _
    $region23: #{tpu_custom_call.1} parent=1 // pred_check_branch
      %35 = sbr.rel (0) target = $region25
    $region24: #{tpu_custom_call.1} parent=1 // pred_region
      _
    $region25: #{tpu_custom_call.1} parent=1 // pred_fallthru
      _
    // Predicated region
    $region26: #{tpu_custom_call.1} parent=1 // pred_check
      _
    $region27: #{tpu_custom_call.1} parent=1 // pred_check_branch
      %37 = sbr.rel (0) target = $region29
    $region28: #{tpu_custom_call.1} parent=1 // pred_region
      %39 = dma.done [#allocation3], 8192
    $region29: #{tpu_custom_call.1} parent=1 // pred_fallthru
      _
    %v40 = vld [vmem:[%s0] sm:$0x3]
    %v41 = vld [vmem:[%s2] sm:$0xff]
    %v42 = vld [vmem:[%s2 + $0x8] sm:$0xff]
    %v43 = vld [vmem:[%s2 + $0x10] sm:$0xff]
    %v44 = vld [vmem:[%s2 + $0x18] sm:$0xff]
    %v45 = vld [vmem:[%s2 + $0x20] sm:$0xff]
    %v46 = vld [vmem:[%s2 + $0x28] sm:$0xff]
    %v47 = vld [vmem:[%s2 + $0x30] sm:$0xff]
    %v48 = vld [vmem:[%s2 + $0x38] sm:$0xff]
    %v49 = vld [vmem:[%s3] sm:$0x3]
    %v51 = vperm.slane %v49, 0
    %v52 = vperm.slane %v49, 1
    %vm55 = vcmask 261120
    %v57 = vsel %vm55, %v40, 0
    %59 = vmatpush.msra.mxu0 0.0
    %60 = vmatpush.msra.mxu0 0.0
    %61 = vmatpush.msra.mxu0 0.0
    %62 = vmatpush.msra.mxu0 0.0
    %63 = vmatpush.msra.mxu0 0.0
    %64 = vmatpush.msra.mxu0 0.0
    %65 = vmatpush.msra.mxu0 0.0
    %66 = vmatpush.msra.mxu0 0.0
    %67 = vmatpush.msra.mxu0 0.0
    %68 = vmatpush.msra.mxu0 0.0
    %69 = vmatpush.msra.mxu0 0.0
    %70 = vmatpush.msra.mxu0 0.0
    %71 = vmatpush.msra.mxu0 %v47
    %72 = vmatpush.msra.mxu0 %v45
    %73 = vmatpush.msra.mxu0 %v43
    %74 = vmatpush.msra.mxu0 %v41
    %75 = vmatmul.f32.gmra.mxu0 %v57
    %v76 = vpop.f32.mrf.mxu0
    %v77 = vadd.f32 %v51, %v76
    %78 = vdwg.mxu0
    %79 = vmatpush.msra.mxu0 0.0
    %80 = vmatpush.msra.mxu0 0.0
    %81 = vmatpush.msra.mxu0 0.0
    %82 = vmatpush.msra.mxu0 0.0
    %83 = vmatpush.msra.mxu0 0.0
    %84 = vmatpush.msra.mxu0 0.0
    %85 = vmatpush.msra.mxu0 0.0
    %86 = vmatpush.msra.mxu0 0.0
    %87 = vmatpush.msra.mxu0 0.0
    %88 = vmatpush.msra.mxu0 0.0
    %89 = vmatpush.msra.mxu0 0.0
    %90 = vmatpush.msra.mxu0 0.0
    %91 = vmatpush.msra.mxu0 %v48
    %92 = vmatpush.msra.mxu0 %v46
    %93 = vmatpush.msra.mxu0 %v44
    %94 = vmatpush.msra.mxu0 %v42
    %95 = vmatmul.f32.gmra.mxu0 %v57
    %v96 = vpop.f32.mrf.mxu0
    %v97 = vadd.f32 %v52, %v96
    %98 = vdwg.mxu0
    %v99 = vld [vmem:[%s1] sm:$0xf]
    %v100 = vld [vmem:[#allocation2] sm:$0xff]
    %v101 = vld [vmem:[#allocation2 + $0x8] sm:$0xff]
    %v102 = vld [vmem:[#allocation2 + $0x10] sm:$0xff]
    %v103 = vld [vmem:[#allocation2 + $0x18] sm:$0xff]
    %v104 = vld [vmem:[#allocation2 + $0x20] sm:$0xff]
    %v105 = vld [vmem:[#allocation2 + $0x28] sm:$0xff]
    %v106 = vld [vmem:[#allocation2 + $0x30] sm:$0xff]
    %v107 = vld [vmem:[#allocation2 + $0x38] sm:$0xff]
    %v108 = vld [vmem:[#allocation2 + $0x40] sm:$0xff]
    %v109 = vld [vmem:[#allocation2 + $0x48] sm:$0xff]
    %v110 = vld [vmem:[#allocation2 + $0x50] sm:$0xff]
    %v111 = vld [vmem:[#allocation2 + $0x58] sm:$0xff]
    %v112 = vld [vmem:[#allocation2 + $0x60] sm:$0xff]
    %v113 = vld [vmem:[#allocation2 + $0x68] sm:$0xff]
    %v114 = vld [vmem:[#allocation2 + $0x70] sm:$0xff]
    %v115 = vld [vmem:[#allocation2 + $0x78] sm:$0xff]
    %v116 = vld [vmem:[#allocation2 + $0x80] sm:$0xff]
    %v117 = vld [vmem:[#allocation2 + $0x88] sm:$0xff]
    %v118 = vld [vmem:[#allocation2 + $0x90] sm:$0xff]
    %v119 = vld [vmem:[#allocation2 + $0x98] sm:$0xff]
    %v120 = vld [vmem:[#allocation2 + $0xa0] sm:$0xff]
    %v121 = vld [vmem:[#allocation2 + $0xa8] sm:$0xff]
    %v122 = vld [vmem:[#allocation2 + $0xb0] sm:$0xff]
    %v123 = vld [vmem:[#allocation2 + $0xb8] sm:$0xff]
    %v124 = vld [vmem:[#allocation2 + $0xc0] sm:$0xff]
    %v125 = vld [vmem:[#allocation2 + $0xc8] sm:$0xff]
    %v126 = vld [vmem:[#allocation2 + $0xd0] sm:$0xff]
    %v127 = vld [vmem:[#allocation2 + $0xd8] sm:$0xff]
    %v128 = vld [vmem:[#allocation2 + $0xe0] sm:$0xff]
    %v129 = vld [vmem:[#allocation2 + $0xe8] sm:$0xff]
    %v130 = vld [vmem:[#allocation2 + $0xf0] sm:$0xff]
    %v131 = vld [vmem:[#allocation2 + $0xf8] sm:$0xff]
    %v132 = vld [vmem:[#allocation2 + $0x100] sm:$0xff]
    %v133 = vld [vmem:[#allocation2 + $0x108] sm:$0xff]
    %v134 = vld [vmem:[#allocation2 + $0x110] sm:$0xff]
    %v135 = vld [vmem:[#allocation2 + $0x118] sm:$0xff]
    %v136 = vld [vmem:[#allocation2 + $0x120] sm:$0xff]
    %v137 = vld [vmem:[#allocation2 + $0x128] sm:$0xff]
    %v138 = vld [vmem:[#allocation2 + $0x130] sm:$0xff]
    %v139 = vld [vmem:[#allocation2 + $0x138] sm:$0xff]
    %v140 = vld [vmem:[#allocation2 + $0x140] sm:$0xff]
    %v141 = vld [vmem:[#allocation2 + $0x148] sm:$0xff]
    %v142 = vld [vmem:[#allocation2 + $0x150] sm:$0xff]
    %v143 = vld [vmem:[#allocation2 + $0x158] sm:$0xff]
    %v144 = vld [vmem:[#allocation2 + $0x160] sm:$0xff]
    %v145 = vld [vmem:[#allocation2 + $0x168] sm:$0xff]
    %v146 = vld [vmem:[#allocation2 + $0x170] sm:$0xff]
    %v147 = vld [vmem:[#allocation2 + $0x178] sm:$0xff]
    %v148 = vld [vmem:[#allocation2 + $0x180] sm:$0xff]
    %v149 = vld [vmem:[#allocation2 + $0x188] sm:$0xff]
    %v150 = vld [vmem:[#allocation2 + $0x190] sm:$0xff]
    %v151 = vld [vmem:[#allocation2 + $0x198] sm:$0xff]
    %v152 = vld [vmem:[#allocation2 + $0x1a0] sm:$0xff]
    %v153 = vld [vmem:[#allocation2 + $0x1a8] sm:$0xff]
    %v154 = vld [vmem:[#allocation2 + $0x1b0] sm:$0xff]
    %v155 = vld [vmem:[#allocation2 + $0x1b8] sm:$0xff]
    %v156 = vld [vmem:[#allocation2 + $0x1c0] sm:$0xff]
    %v157 = vld [vmem:[#allocation2 + $0x1c8] sm:$0xff]
    %v158 = vld [vmem:[#allocation2 + $0x1d0] sm:$0xff]
    %v159 = vld [vmem:[#allocation2 + $0x1d8] sm:$0xff]
    %v160 = vld [vmem:[#allocation2 + $0x1e0] sm:$0xff]
    %v161 = vld [vmem:[#allocation2 + $0x1e8] sm:$0xff]
    %v162 = vld [vmem:[#allocation2 + $0x1f0] sm:$0xff]
    %v163 = vld [vmem:[#allocation2 + $0x1f8] sm:$0xff]
    %165 = vst [vmem:[#allocation1] ss:$4 sm:$0xff] %v99
    %v166 = vld.sshfl [vmem:[#allocation1] sm:$0xff pattern:$0x73625140]
    %v167 = vld.sshfl [vmem:[#allocation1 + $0x8] sm:$0xff pattern:$0x73625140]
    %170 = vmatpush.msra.mxu0 %v130
    %171 = vmatpush.msra.mxu0 %v128
    %172 = vmatpush.msra.mxu0 %v126
    %173 = vmatpush.msra.mxu0 %v124
    %174 = vmatpush.msra.mxu0 %v122
    %175 = vmatpush.msra.mxu0 %v120
    %176 = vmatpush.msra.mxu0 %v118
    %177 = vmatpush.msra.mxu0 %v116
    %178 = vmatpush.msra.mxu0 %v114
    %179 = vmatpush.msra.mxu0 %v112
    %180 = vmatpush.msra.mxu0 %v110
    %181 = vmatpush.msra.mxu0 %v108
    %182 = vmatpush.msra.mxu0 %v106
    %183 = vmatpush.msra.mxu0 %v104
    %184 = vmatpush.msra.mxu0 %v102
    %185 = vmatpush.msra.mxu0 %v100
    %186 = vmatmul.f32.gmra.mxu0 %v166
    %v187 = vpop.f32.mrf.mxu0
    %v188 = vadd.f32 0.0, %v187
    %189 = vdwg.mxu0
    %190 = vmatpush.msra.mxu0 %v162
    %191 = vmatpush.msra.mxu0 %v160
    %192 = vmatpush.msra.mxu0 %v158
    %193 = vmatpush.msra.mxu0 %v156
    %194 = vmatpush.msra.mxu0 %v154
    %195 = vmatpush.msra.mxu0 %v152
    %196 = vmatpush.msra.mxu0 %v150
    %197 = vmatpush.msra.mxu0 %v148
    %198 = vmatpush.msra.mxu0 %v146
    %199 = vmatpush.msra.mxu0 %v144
    %200 = vmatpush.msra.mxu0 %v142
    %201 = vmatpush.msra.mxu0 %v140
    %202 = vmatpush.msra.mxu0 %v138
    %203 = vmatpush.msra.mxu0 %v136
    %204 = vmatpush.msra.mxu0 %v134
    %205 = vmatpush.msra.mxu0 %v132
    %206 = vmatmul.f32.gmra.mxu0 %v167
    %v207 = vpop.f32.mrf.mxu0
    %v208 = vadd.f32 %v188, %v207
    %209 = vdwg.mxu0
    %210 = vmatpush.msra.mxu0 %v131
    %211 = vmatpush.msra.mxu0 %v129
    %212 = vmatpush.msra.mxu0 %v127
    %213 = vmatpush.msra.mxu0 %v125
    %214 = vmatpush.msra.mxu0 %v123
    %215 = vmatpush.msra.mxu0 %v121
    %216 = vmatpush.msra.mxu0 %v119
    %217 = vmatpush.msra.mxu0 %v117
    %218 = vmatpush.msra.mxu0 %v115
    %219 = vmatpush.msra.mxu0 %v113
    %220 = vmatpush.msra.mxu0 %v111
    %221 = vmatpush.msra.mxu0 %v109
    %222 = vmatpush.msra.mxu0 %v107
    %223 = vmatpush.msra.mxu0 %v105
    %224 = vmatpush.msra.mxu0 %v103
    %225 = vmatpush.msra.mxu0 %v101
    %226 = vmatmul.f32.gmra.mxu0 %v166
    %v227 = vpop.f32.mrf.mxu0
    %v228 = vadd.f32 0.0, %v227
    %229 = vdwg.mxu0
    %230 = vmatpush.msra.mxu0 %v163
    %231 = vmatpush.msra.mxu0 %v161
    %232 = vmatpush.msra.mxu0 %v159
    %233 = vmatpush.msra.mxu0 %v157
    %234 = vmatpush.msra.mxu0 %v155
    %235 = vmatpush.msra.mxu0 %v153
    %236 = vmatpush.msra.mxu0 %v151
    %237 = vmatpush.msra.mxu0 %v149
    %238 = vmatpush.msra.mxu0 %v147
    %239 = vmatpush.msra.mxu0 %v145
    %240 = vmatpush.msra.mxu0 %v143
    %241 = vmatpush.msra.mxu0 %v141
    %242 = vmatpush.msra.mxu0 %v139
    %243 = vmatpush.msra.mxu0 %v137
    %244 = vmatpush.msra.mxu0 %v135
    %245 = vmatpush.msra.mxu0 %v133
    %246 = vmatmul.f32.gmra.mxu0 %v167
    %v247 = vpop.f32.mrf.mxu0
    %v248 = vadd.f32 %v228, %v247
    %249 = vdwg.mxu0
    %v250 = vadd.f32 %v77, %v208
    %v251 = vadd.f32 %v97, %v248
    %v252 = vtanh.pop %v250
    %v253 = vtanh.pop %v251
    %v254 = vld [vmem:[%s5] sm:$0xff]
    %v255 = vld [vmem:[%s5 + $0x8] sm:$0xff]
    %v256 = vld [vmem:[%s5 + $0x10] sm:$0xff]
    %v257 = vld [vmem:[%s5 + $0x18] sm:$0xff]
    %v258 = vld [vmem:[%s5 + $0x20] sm:$0xff]
    %v259 = vld [vmem:[%s5 + $0x28] sm:$0xff]
    %v260 = vld [vmem:[%s5 + $0x30] sm:$0xff]
    %v261 = vld [vmem:[%s5 + $0x38] sm:$0xff]
    %v262 = vld [vmem:[%s5 + $0x40] sm:$0xff]
    %v263 = vld [vmem:[%s5 + $0x48] sm:$0xff]
    %v264 = vld [vmem:[%s5 + $0x50] sm:$0xff]
    %v265 = vld [vmem:[%s5 + $0x58] sm:$0xff]
    %v266 = vld [vmem:[%s5 + $0x60] sm:$0xff]
    %v267 = vld [vmem:[%s5 + $0x68] sm:$0xff]
    %v268 = vld [vmem:[%s5 + $0x70] sm:$0xff]
    %v269 = vld [vmem:[%s5 + $0x78] sm:$0xff]
    %v270 = vld [vmem:[%s5 + $0x80] sm:$0xff]
    %v271 = vld [vmem:[%s5 + $0x88] sm:$0xff]
    %v272 = vld [vmem:[%s5 + $0x90] sm:$0xff]
    %v273 = vld [vmem:[%s5 + $0x98] sm:$0xff]
    %v274 = vld [vmem:[%s5 + $0xa0] sm:$0xff]
    %v275 = vld [vmem:[%s5 + $0xa8] sm:$0xff]
    %v276 = vld [vmem:[%s5 + $0xb0] sm:$0xff]
    %v277 = vld [vmem:[%s5 + $0xb8] sm:$0xff]
    %v278 = vld [vmem:[%s5 + $0xc0] sm:$0xff]
    %v279 = vld [vmem:[%s5 + $0xc8] sm:$0xff]
    %v280 = vld [vmem:[%s5 + $0xd0] sm:$0xff]
    %v281 = vld [vmem:[%s5 + $0xd8] sm:$0xff]
    %v282 = vld [vmem:[%s5 + $0xe0] sm:$0xff]
    %v283 = vld [vmem:[%s5 + $0xe8] sm:$0xff]
    %v284 = vld [vmem:[%s5 + $0xf0] sm:$0xff]
    %v285 = vld [vmem:[%s5 + $0xf8] sm:$0xff]
    %286 = vmatpush.msra.mxu0 %v269
    %287 = vmatpush.msra.mxu0 %v268
    %288 = vmatpush.msra.mxu0 %v267
    %289 = vmatpush.msra.mxu0 %v266
    %290 = vmatpush.msra.mxu0 %v265
    %291 = vmatpush.msra.mxu0 %v264
    %292 = vmatpush.msra.mxu0 %v263
    %293 = vmatpush.msra.mxu0 %v262
    %294 = vmatpush.msra.mxu0 %v261
    %295 = vmatpush.msra.mxu0 %v260
    %296 = vmatpush.msra.mxu0 %v259
    %297 = vmatpush.msra.mxu0 %v258
    %298 = vmatpush.msra.mxu0 %v257
    %299 = vmatpush.msra.mxu0 %v256
    %300 = vmatpush.msra.mxu0 %v255
    %301 = vmatpush.msra.mxu0 %v254
    %302 = vmatmul.f32.gmra.mxu0 %v252
    %v303 = vpop.f32.mrf.mxu0
    %v304 = vadd.f32 0.0, %v303
    %305 = vdwg.mxu0
    %306 = vmatpush.msra.mxu0 %v285
    %307 = vmatpush.msra.mxu0 %v284
    %308 = vmatpush.msra.mxu0 %v283
    %309 = vmatpush.msra.mxu0 %v282
    %310 = vmatpush.msra.mxu0 %v281
    %311 = vmatpush.msra.mxu0 %v280
    %312 = vmatpush.msra.mxu0 %v279
    %313 = vmatpush.msra.mxu0 %v278
    %314 = vmatpush.msra.mxu0 %v277
    %315 = vmatpush.msra.mxu0 %v276
    %316 = vmatpush.msra.mxu0 %v275
    %317 = vmatpush.msra.mxu0 %v274
    %318 = vmatpush.msra.mxu0 %v273
    %319 = vmatpush.msra.mxu0 %v272
    %320 = vmatpush.msra.mxu0 %v271
    %321 = vmatpush.msra.mxu0 %v270
    %322 = vmatmul.f32.gmra.mxu0 %v253
    %v323 = vpop.f32.mrf.mxu0
    %v324 = vadd.f32 %v304, %v323
    %325 = vdwg.mxu0
    %vm326 = vcmask 58368
    %327 = vst.msk [vmem:[#allocation5] sm:$0x3] %vm326, %v324
    // Predicated region
    $region30: #{tpu_custom_call.1} parent=1 // pred_check
      _
    $region31: #{tpu_custom_call.1} parent=1 // pred_check_branch
      %329 = sbr.rel (0) target = $region33
    $region32: #{tpu_custom_call.1} parent=1 // pred_region
      %331 = vsyncadd [#allocation4], 0
      %s333 = sshll.u32 [#allocation5], 4
      %s334 = int_to_ptr.vmem [resolvable:$true] %s333
      %s335 = sshll.u32 %s6, 4
      %s336 = int_to_ptr.hbm [resolvable:$true] %s335
      %338 = dma.vmem_to_hbm [thread:$0]  %s334, 32, %s336, [#allocation4]
    $region33: #{tpu_custom_call.1} parent=1 // pred_fallthru
      _
    // Predicated region
    $region34: #{tpu_custom_call.1} parent=1 // pred_check
      _
    $region35: #{tpu_custom_call.1} parent=1 // pred_check_branch
      %340 = sbr.rel (0) target = $region37
    $region36: #{tpu_custom_call.1} parent=1 // pred_region
      %342 = dma.done [#allocation4], 32
    $region37: #{tpu_custom_call.1} parent=1 // pred_fallthru
      _
    %343 = vsyncpa [#allocation3], 1
    %344 = vsyncpa [#allocation4], 1

</llo_original>
